<compile_context>
chip_gen: v6e
topology: v6e:2x2x1
jax: 0.10.0
libtpu: 0.0.40
codegen_flags: <defaults>
</compile_context>

<pallas_src>
import functools

import jax
import jax.numpy as jnp
from jax.experimental import pallas as pl
from jax.experimental.pallas import tpu as pltpu


def _session_gnn_kernel(a_ref, h_ref, wm_ref, wh_ref, bf_ref, bc_ref,
                        out_ref, *, num_steps):
    TB, N, H = h_ref.shape
    R = TB * N
    cdt = wm_ref.dtype                      # MXU operand dtype (bf16 or f32)

    a = a_ref[...]                          # (TB, N, N) f32 (stays f32)
    wm = wm_ref[...]                        # (H, 4H)  packed [r|i|n|0]
    wh = wh_ref[...]                        # (H, 4H)  packed [r|i|0|n]
    bf = bf_ref[...]                        # (1, 4H)  folded edge bias (f32)
    bc = bc_ref[...]                        # (1, 4H)  constant bias     (f32)

    # rowsum(A) carries the folded edge bias through the A-propagation.
    # Step-invariant; only the tiny (R, 1) column is kept live.
    arow = jnp.sum(a, axis=-1, keepdims=True).reshape(R, 1)   # (R, 1) f32

    # N == 8 == f32 sublane count, so this flatten is layout-preserving.
    h = h_ref[...].reshape(R, H)                               # (R, H) f32

    def gnn_step(h):
        # Message passing on the VPU: m = A @ h as an unrolled outer-product
        # multiply-accumulate (keeps the MXU free for the weight matmuls and
        # keeps the A contraction in f32).
        h3 = h.reshape(TB, N, H)
        m = a[:, :, 0:1] * h3[:, 0:1, :]
        for j in range(1, N):
            m = m + a[:, :, j:j + 1] * h3[:, j:j + 1, :]
        m = m.reshape(R, H)

        # Two lane-dense MXU matmuls produce all gate pre-activations:
        #   g[:, 0:H]   = i_r + h_r     g[:, H:2H]  = i_i + h_i
        #   g[:, 2H:3H] = i_n           g[:, 3H:4H] = h_n
        g = (jnp.dot(m.astype(cdt), wm, preferred_element_type=jnp.float32)
             + jnp.dot(h.astype(cdt), wh, preferred_element_type=jnp.float32)
             + arow * bf + bc)                                 # (R, 4H) f32

        resetgate = jax.nn.sigmoid(g[:, 0:H])
        inputgate = jax.nn.sigmoid(g[:, H:2 * H])
        newgate = jnp.tanh(g[:, 2 * H:3 * H] + resetgate * g[:, 3 * H:4 * H])
        return newgate + inputgate * (h - newgate)

    if num_steps <= 4:
        for _ in range(num_steps):          # small step counts: full unroll
            h = gnn_step(h)
    else:                                   # large step counts: bound live set
        h = jax.lax.fori_loop(0, num_steps, lambda _, hh: gnn_step(hh), h)

    out_ref[...] = h.reshape(TB, N, H).astype(out_ref.dtype)


def fold_params(raw_params, compute_dtype=jnp.bfloat16):
    """Fold edge linears into the GRU input weights and pack per-gate blocks
    into two lane-dense (H, 4H) matrices + two (1, 4H) bias rows."""
    w_in, b_in, w_out, b_out, w_ih, b_ih, w_hh, b_hh = raw_params
    H = w_in.shape[0]

    wih_t = w_ih.T                                  # (2H, 3H)
    top, bot = wih_t[:H], wih_t[H:]                 # each (H, 3H)
    w_fold = w_in.T @ top + w_out.T @ bot           # (H, 3H)   gates [r|i|n]
    b_fold = b_in @ top + b_out @ bot               # (3H,)
    whh_t = w_hh.T                                  # (H, 3H)   gates [r|i|n]

    zW = jnp.zeros((H, H), jnp.float32)
    zb = jnp.zeros((H,), jnp.float32)

    # Wm applied to m = A@h: columns [Wf_r | Wf_i | Wf_n | 0]
    wm = jnp.concatenate([w_fold, zW], axis=1).astype(compute_dtype)
    # Wh applied to h:       columns [Wh_r | Wh_i | 0 | Wh_n]
    wh = jnp.concatenate([whh_t[:, :2 * H], zW, whh_t[:, 2 * H:]],
                         axis=1).astype(compute_dtype)
    # Folded edge bias (scaled by rowsum(A)): [bf_r | bf_i | bf_n | 0]
    bf = jnp.concatenate([b_fold, zb]).reshape(1, 4 * H).astype(jnp.float32)
    # Constant bias: [bih_r+bhh_r | bih_i+bhh_i | bih_n | bhh_n]
    bc = jnp.concatenate([b_ih[:2 * H] + b_hh[:2 * H],
                          b_ih[2 * H:], b_hh[2 * H:]]
                         ).reshape(1, 4 * H).astype(jnp.float32)
    return wm, wh, bf, bc


def session_gnn_forward(A, hidden, raw_params, step=1,
                        compute_dtype=jnp.bfloat16,
                        target_rows=2048, max_tb=512):
    """SessionGNN.forward: `step` GNNCell updates, fused in one pallas_call."""
    B, N, H = hidden.shape
    wm, wh, bf, bc = fold_params(raw_params, compute_dtype)

    # Sessions per block: target ~target_rows MXU rows per grid step, capped
    # so lane-padded A/hidden/out blocks (+ double buffering) stay within
    # v7x's default scoped VMEM.  Keep >= 2 grid steps so the "parallel"
    # batch axis shards across both v7x TensorCores.
    tb = max(1, min(max_tb, target_rows // N))
    if B <= tb:
        tb = max(1, pl.cdiv(B, 2))
    grid_b = pl.cdiv(B, tb)
    b_pad = grid_b * tb

    a_in, h_in = A, hidden
    if b_pad != B:
        pad = ((0, b_pad - B), (0, 0), (0, 0))
        a_in = jnp.pad(A, pad)
        h_in = jnp.pad(hidden, pad)

    kernel = functools.partial(_session_gnn_kernel, num_steps=step)

    out = pl.pallas_call(
        kernel,
        out_shape=jax.ShapeDtypeStruct((b_pad, N, H), hidden.dtype),
        grid_spec=pltpu.PrefetchScalarGridSpec(
            num_scalar_prefetch=0,
            grid=(grid_b,),
            in_specs=[
                pl.BlockSpec((tb, N, N), lambda b: (b, 0, 0)),   # A block
                pl.BlockSpec((tb, N, H), lambda b: (b, 0, 0)),   # hidden block
                pl.BlockSpec((H, 4 * H), lambda b: (0, 0)),      # Wm (packed)
                pl.BlockSpec((H, 4 * H), lambda b: (0, 0)),      # Wh (packed)
                pl.BlockSpec((1, 4 * H), lambda b: (0, 0)),      # folded bias
                pl.BlockSpec((1, 4 * H), lambda b: (0, 0)),      # const bias
            ],
            out_specs=pl.BlockSpec((tb, N, H), lambda b: (b, 0, 0)),
        ),
        compiler_params=pltpu.CompilerParams(
            dimension_semantics=("parallel",)),
    )(a_in, h_in, wm, wh, bf, bc)

    return out[:B] if b_pad != B else out


def session_gnn_reference(A, hidden, raw_params, step=1):
    """Pure-JAX reference mirroring the PyTorch forward exactly (unfused)."""
    w_in, b_in, w_out, b_out, w_ih, b_ih, w_hh, b_hh = raw_params
    H = hidden.shape[-1]
    for _ in range(step):
        input_in = jnp.matmul(A, hidden @ w_in.T + b_in)
        input_out = jnp.matmul(A, hidden @ w_out.T + b_out)
        inputs = jnp.concatenate([input_in, input_out], axis=2)
        gi = inputs @ w_ih.T + b_ih
        gh = hidden @ w_hh.T + b_hh
        i_r, i_i, i_n = gi[..., :H], gi[..., H:2 * H], gi[..., 2 * H:]
        h_r, h_i, h_n = gh[..., :H], gh[..., H:2 * H], gh[..., 2 * H:]
        resetgate = jax.nn.sigmoid(i_r + h_r)
        inputgate = jax.nn.sigmoid(i_i + h_i)
        newgate = jnp.tanh(i_n + resetgate * h_n)
        hidden = newgate + inputgate * (hidden - newgate)
    return hidden


def init_raw_params(key, hidden_size):
    """Deterministic synthetic params in PyTorch shapes (weights are (out,in))."""
    H = hidden_size
    ks = jax.random.split(key, 8)
    s = 1.0 / jnp.sqrt(H)
    u = lambda k, shape: jax.random.uniform(k, shape, jnp.float32, -s, s)
    w_in, b_in = u(ks[0], (H, H)), u(ks[1], (H,))
    w_out, b_out = u(ks[2], (H, H)), u(ks[3], (H,))
    w_ih, b_ih = u(ks[4], (3 * H, 2 * H)), u(ks[5], (3 * H,))
    w_hh, b_hh = u(ks[6], (3 * H, H)), u(ks[7], (3 * H,))
    return (w_in, b_in, w_out, b_out, w_ih, b_ih, w_hh, b_hh)


if __name__ == "__main__":
    B, N, H = 2, 8, 32     # sessions, nodes per session, hidden size
    STEP = 1

    key = jax.random.PRNGKey(0)
    k_a, k_h, k_p = jax.random.split(key, 3)

    A = jax.random.uniform(k_a, (B, N, N), jnp.float32)
    hidden = jax.random.normal(k_h, (B, N, H), jnp.float32)
    raw_params = init_raw_params(k_p, H)

    ref = session_gnn_reference(A, hidden, raw_params, step=STEP)

    # Tight check on the f32 compute path (fold / gate packing is exact up to
    # matmul reassociation).
    out_f32 = jax.block_until_ready(
        session_gnn_forward(A, hidden, raw_params, step=STEP,
                            compute_dtype=jnp.float32))
    assert out_f32.shape == (B, N, H)
    assert jnp.allclose(out_f32, ref, atol=5e-4, rtol=5e-4), "f32 mismatch vs reference"

    # Production path: bf16 MXU operands, f32 A-contraction / accumulation / gates.
    out = jax.block_until_ready(
        session_gnn_forward(A, hidden, raw_params, step=STEP,
                            compute_dtype=jnp.bfloat16))
    assert out.shape == (B, N, H)
    assert jnp.allclose(out, ref, atol=5e-2, rtol=5e-2), "bf16 mismatch vs reference"

    print("KERNEL_OK")
</pallas_src>

<mosaic_0001>
module attributes {stable_mosaic.version = 11 : i64} {
  func.func @_session_gnn_kernel(%arg0: i32, %arg1: memref<1x8x8xf32, #tpu.memory_space<vmem>>, %arg2: memref<1x8x32xf32, #tpu.memory_space<vmem>>, %arg3: memref<32x128xf32, #tpu.memory_space<vmem>>, %arg4: memref<32x128xf32, #tpu.memory_space<vmem>>, %arg5: memref<1x128xf32, #tpu.memory_space<vmem>>, %arg6: memref<1x128xf32, #tpu.memory_space<vmem>>, %arg7: memref<1x8x32xf32, #tpu.memory_space<vmem>>) attributes {dimension_semantics = [#tpu.dimension_semantics<parallel>], iteration_bounds = array<i64: 2>, scalar_prefetch = 0 : i64, scratch_operands = 0 : i64, tpu.core_type = #tpu.core_type<tc>, window_params = [{transform_indices = @transform_0, window_bounds = array<i64: 1, 8, 8>}, {transform_indices = @transform_1, window_bounds = array<i64: 1, 8, 32>}, {pipeline_mode = #tpu.pipeline_mode<synchronous>, transform_indices = @transform_2, window_bounds = array<i64: 32, 128>}, {pipeline_mode = #tpu.pipeline_mode<synchronous>, transform_indices = @transform_3, window_bounds = array<i64: 32, 128>}, {pipeline_mode = #tpu.pipeline_mode<synchronous>, transform_indices = @transform_4, window_bounds = array<i64: 1, 128>}, {pipeline_mode = #tpu.pipeline_mode<synchronous>, transform_indices = @transform_5, window_bounds = array<i64: 1, 128>}, {transform_indices = @transform_6, window_bounds = array<i64: 1, 8, 32>}]} {
    %c0 = arith.constant 0 : index
    %c0_0 = arith.constant 0 : index
    %c0_1 = arith.constant 0 : index
    %0 = vector.load %arg1[%c0, %c0_0, %c0_1] : memref<1x8x8xf32, #tpu.memory_space<vmem>>, vector<1x8x8xf32>
    %c0_2 = arith.constant 0 : index
    %c0_3 = arith.constant 0 : index
    %1 = vector.load %arg3[%c0_2, %c0_3] : memref<32x128xf32, #tpu.memory_space<vmem>>, vector<32x128xf32>
    %c0_4 = arith.constant 0 : index
    %c0_5 = arith.constant 0 : index
    %2 = vector.load %arg4[%c0_4, %c0_5] : memref<32x128xf32, #tpu.memory_space<vmem>>, vector<32x128xf32>
    %c0_6 = arith.constant 0 : index
    %c0_7 = arith.constant 0 : index
    %3 = vector.load %arg5[%c0_6, %c0_7] : memref<1x128xf32, #tpu.memory_space<vmem>>, vector<1x128xf32>
    %c0_8 = arith.constant 0 : index
    %c0_9 = arith.constant 0 : index
    %4 = vector.load %arg6[%c0_8, %c0_9] : memref<1x128xf32, #tpu.memory_space<vmem>>, vector<1x128xf32>
    %cst = arith.constant dense<0.000000e+00> : vector<1x8xf32>
    %5 = vector.multi_reduction <add>, %0, %cst [2] : vector<1x8x8xf32> to vector<1x8xf32>
    %6 = vector.shape_cast %5 : vector<1x8xf32> to vector<1x8x1xf32>
    %7 = vector.shape_cast %6 : vector<1x8x1xf32> to vector<8x1xf32>
    %c0_10 = arith.constant 0 : index
    %c0_11 = arith.constant 0 : index
    %c0_12 = arith.constant 0 : index
    %8 = vector.load %arg2[%c0_10, %c0_11, %c0_12] : memref<1x8x32xf32, #tpu.memory_space<vmem>>, vector<1x8x32xf32>
    %9 = vector.shape_cast %8 : vector<1x8x32xf32> to vector<8x32xf32>
    %10 = vector.shape_cast %9 : vector<8x32xf32> to vector<1x8x32xf32>
    %11 = vector.extract_strided_slice %0 {offsets = [0, 0, 0], sizes = [1, 8, 1], strides = [1, 1, 1]} : vector<1x8x8xf32> to vector<1x8x1xf32>
    %12 = vector.extract_strided_slice %10 {offsets = [0, 0, 0], sizes = [1, 1, 32], strides = [1, 1, 1]} : vector<1x8x32xf32> to vector<1x1x32xf32>
    %13 = vector.broadcast %11 : vector<1x8x1xf32> to vector<1x8x32xf32>
    %14 = vector.broadcast %12 : vector<1x1x32xf32> to vector<1x8x32xf32>
    %15 = arith.mulf %13, %14 : vector<1x8x32xf32>
    %16 = vector.extract_strided_slice %0 {offsets = [0, 0, 1], sizes = [1, 8, 1], strides = [1, 1, 1]} : vector<1x8x8xf32> to vector<1x8x1xf32>
    %17 = vector.extract_strided_slice %10 {offsets = [0, 1, 0], sizes = [1, 1, 32], strides = [1, 1, 1]} : vector<1x8x32xf32> to vector<1x1x32xf32>
    %18 = vector.broadcast %16 : vector<1x8x1xf32> to vector<1x8x32xf32>
    %19 = vector.broadcast %17 : vector<1x1x32xf32> to vector<1x8x32xf32>
    %20 = arith.mulf %18, %19 : vector<1x8x32xf32>
    %21 = arith.addf %15, %20 : vector<1x8x32xf32>
    %22 = vector.extract_strided_slice %0 {offsets = [0, 0, 2], sizes = [1, 8, 1], strides = [1, 1, 1]} : vector<1x8x8xf32> to vector<1x8x1xf32>
    %23 = vector.extract_strided_slice %10 {offsets = [0, 2, 0], sizes = [1, 1, 32], strides = [1, 1, 1]} : vector<1x8x32xf32> to vector<1x1x32xf32>
    %24 = vector.broadcast %22 : vector<1x8x1xf32> to vector<1x8x32xf32>
    %25 = vector.broadcast %23 : vector<1x1x32xf32> to vector<1x8x32xf32>
    %26 = arith.mulf %24, %25 : vector<1x8x32xf32>
    %27 = arith.addf %21, %26 : vector<1x8x32xf32>
    %28 = vector.extract_strided_slice %0 {offsets = [0, 0, 3], sizes = [1, 8, 1], strides = [1, 1, 1]} : vector<1x8x8xf32> to vector<1x8x1xf32>
    %29 = vector.extract_strided_slice %10 {offsets = [0, 3, 0], sizes = [1, 1, 32], strides = [1, 1, 1]} : vector<1x8x32xf32> to vector<1x1x32xf32>
    %30 = vector.broadcast %28 : vector<1x8x1xf32> to vector<1x8x32xf32>
    %31 = vector.broadcast %29 : vector<1x1x32xf32> to vector<1x8x32xf32>
    %32 = arith.mulf %30, %31 : vector<1x8x32xf32>
    %33 = arith.addf %27, %32 : vector<1x8x32xf32>
    %34 = vector.extract_strided_slice %0 {offsets = [0, 0, 4], sizes = [1, 8, 1], strides = [1, 1, 1]} : vector<1x8x8xf32> to vector<1x8x1xf32>
    %35 = vector.extract_strided_slice %10 {offsets = [0, 4, 0], sizes = [1, 1, 32], strides = [1, 1, 1]} : vector<1x8x32xf32> to vector<1x1x32xf32>
    %36 = vector.broadcast %34 : vector<1x8x1xf32> to vector<1x8x32xf32>
    %37 = vector.broadcast %35 : vector<1x1x32xf32> to vector<1x8x32xf32>
    %38 = arith.mulf %36, %37 : vector<1x8x32xf32>
    %39 = arith.addf %33, %38 : vector<1x8x32xf32>
    %40 = vector.extract_strided_slice %0 {offsets = [0, 0, 5], sizes = [1, 8, 1], strides = [1, 1, 1]} : vector<1x8x8xf32> to vector<1x8x1xf32>
    %41 = vector.extract_strided_slice %10 {offsets = [0, 5, 0], sizes = [1, 1, 32], strides = [1, 1, 1]} : vector<1x8x32xf32> to vector<1x1x32xf32>
    %42 = vector.broadcast %40 : vector<1x8x1xf32> to vector<1x8x32xf32>
    %43 = vector.broadcast %41 : vector<1x1x32xf32> to vector<1x8x32xf32>
    %44 = arith.mulf %42, %43 : vector<1x8x32xf32>
    %45 = arith.addf %39, %44 : vector<1x8x32xf32>
    %46 = vector.extract_strided_slice %0 {offsets = [0, 0, 6], sizes = [1, 8, 1], strides = [1, 1, 1]} : vector<1x8x8xf32> to vector<1x8x1xf32>
    %47 = vector.extract_strided_slice %10 {offsets = [0, 6, 0], sizes = [1, 1, 32], strides = [1, 1, 1]} : vector<1x8x32xf32> to vector<1x1x32xf32>
    %48 = vector.broadcast %46 : vector<1x8x1xf32> to vector<1x8x32xf32>
    %49 = vector.broadcast %47 : vector<1x1x32xf32> to vector<1x8x32xf32>
    %50 = arith.mulf %48, %49 : vector<1x8x32xf32>
    %51 = arith.addf %45, %50 : vector<1x8x32xf32>
    %52 = vector.extract_strided_slice %0 {offsets = [0, 0, 7], sizes = [1, 8, 1], strides = [1, 1, 1]} : vector<1x8x8xf32> to vector<1x8x1xf32>
    %53 = vector.extract_strided_slice %10 {offsets = [0, 7, 0], sizes = [1, 1, 32], strides = [1, 1, 1]} : vector<1x8x32xf32> to vector<1x1x32xf32>
    %54 = vector.broadcast %52 : vector<1x8x1xf32> to vector<1x8x32xf32>
    %55 = vector.broadcast %53 : vector<1x1x32xf32> to vector<1x8x32xf32>
    %56 = arith.mulf %54, %55 : vector<1x8x32xf32>
    %57 = arith.addf %51, %56 : vector<1x8x32xf32>
    %58 = vector.shape_cast %57 : vector<1x8x32xf32> to vector<8x32xf32>
    %cst_13 = arith.constant dense<0.000000e+00> : vector<8x128xf32>
    %59 = tpu.matmul %58, %1, %cst_13 {dimension_numbers = #tpu.dot_dimension_numbers<[1], [0], [0], [1], [0, 0, 1, 1], [], []>} : vector<8x32xf32>, vector<32x128xf32>, vector<8x128xf32> -> vector<8x128xf32>
    %cst_14 = arith.constant dense<0.000000e+00> : vector<8x128xf32>
    %60 = tpu.matmul %9, %2, %cst_14 {dimension_numbers = #tpu.dot_dimension_numbers<[1], [0], [0], [1], [0, 0, 1, 1], [], []>} : vector<8x32xf32>, vector<32x128xf32>, vector<8x128xf32> -> vector<8x128xf32>
    %61 = arith.addf %59, %60 : vector<8x128xf32>
    %62 = vector.broadcast %7 : vector<8x1xf32> to vector<8x128xf32>
    %63 = vector.broadcast %3 : vector<1x128xf32> to vector<8x128xf32>
    %64 = arith.mulf %62, %63 : vector<8x128xf32>
    %65 = arith.addf %61, %64 : vector<8x128xf32>
    %66 = vector.broadcast %4 : vector<1x128xf32> to vector<8x128xf32>
    %67 = arith.addf %65, %66 : vector<8x128xf32>
    %68 = vector.extract_strided_slice %67 {offsets = [0, 0], sizes = [8, 32], strides = [1, 1]} : vector<8x128xf32> to vector<8x32xf32>
    %69 = arith.negf %68 : vector<8x32xf32>
    %70 = math.exp %69 : vector<8x32xf32>
    %cst_15 = arith.constant 1.000000e+00 : f32
    %71 = vector.broadcast %cst_15 : f32 to vector<8x32xf32>
    %72 = arith.addf %71, %70 : vector<8x32xf32>
    %73 = arith.divf %71, %72 : vector<8x32xf32>
    %74 = vector.extract_strided_slice %67 {offsets = [0, 32], sizes = [8, 32], strides = [1, 1]} : vector<8x128xf32> to vector<8x32xf32>
    %75 = arith.negf %74 : vector<8x32xf32>
    %76 = math.exp %75 : vector<8x32xf32>
    %cst_16 = arith.constant 1.000000e+00 : f32
    %77 = vector.broadcast %cst_16 : f32 to vector<8x32xf32>
    %78 = arith.addf %77, %76 : vector<8x32xf32>
    %79 = arith.divf %77, %78 : vector<8x32xf32>
    %80 = vector.extract_strided_slice %67 {offsets = [0, 64], sizes = [8, 32], strides = [1, 1]} : vector<8x128xf32> to vector<8x32xf32>
    %81 = vector.extract_strided_slice %67 {offsets = [0, 96], sizes = [8, 32], strides = [1, 1]} : vector<8x128xf32> to vector<8x32xf32>
    %82 = arith.mulf %73, %81 : vector<8x32xf32>
    %83 = arith.addf %80, %82 : vector<8x32xf32>
    %84 = math.tanh %83 : vector<8x32xf32>
    %85 = arith.subf %9, %84 : vector<8x32xf32>
    %86 = arith.mulf %79, %85 : vector<8x32xf32>
    %87 = arith.addf %84, %86 : vector<8x32xf32>
    %88 = vector.shape_cast %87 : vector<8x32xf32> to vector<1x8x32xf32>
    %c0_17 = arith.constant 0 : index
    %c0_18 = arith.constant 0 : index
    %c0_19 = arith.constant 0 : index
    %89 = vector.load %arg7[%c0_17, %c0_18, %c0_19] : memref<1x8x32xf32, #tpu.memory_space<vmem>>, vector<1x8x32xf32>
    tpu.vector_store %arg7[%c0_17, %c0_18, %c0_19], %88 {strides = array<i32>} : memref<1x8x32xf32, #tpu.memory_space<vmem>>, vector<1x8x32xf32>,
    return
  }
  func.func @transform_0(%arg0: i32) -> (i32, i32, i32) {
    %c0_i32 = arith.constant 0 : i32
    %c0_i32_0 = arith.constant 0 : i32
    %c0_i32_1 = arith.constant 0 : i32
    return %arg0, %c0_i32, %c0_i32_0 : i32, i32, i32
  }
  func.func @transform_1(%arg0: i32) -> (i32, i32, i32) {
    %c0_i32 = arith.constant 0 : i32
    %c0_i32_0 = arith.constant 0 : i32
    %c0_i32_1 = arith.constant 0 : i32
    return %arg0, %c0_i32, %c0_i32_0 : i32, i32, i32
  }
  func.func @transform_2(%arg0: i32) -> (i32, i32) {
    %c0_i32 = arith.constant 0 : i32
    %c0_i32_0 = arith.constant 0 : i32
    %c0_i32_1 = arith.constant 0 : i32
    return %c0_i32, %c0_i32_0 : i32, i32
  }
  func.func @transform_3(%arg0: i32) -> (i32, i32) {
    %c0_i32 = arith.constant 0 : i32
    %c0_i32_0 = arith.constant 0 : i32
    %c0_i32_1 = arith.constant 0 : i32
    return %c0_i32, %c0_i32_0 : i32, i32
  }
  func.func @transform_4(%arg0: i32) -> (i32, i32) {
    %c0_i32 = arith.constant 0 : i32
    %c0_i32_0 = arith.constant 0 : i32
    %c0_i32_1 = arith.constant 0 : i32
    return %c0_i32, %c0_i32_0 : i32, i32
  }
  func.func @transform_5(%arg0: i32) -> (i32, i32) {
    %c0_i32 = arith.constant 0 : i32
    %c0_i32_0 = arith.constant 0 : i32
    %c0_i32_1 = arith.constant 0 : i32
    return %c0_i32, %c0_i32_0 : i32, i32
  }
  func.func @transform_6(%arg0: i32) -> (i32, i32, i32) {
    %c0_i32 = arith.constant 0 : i32
    %c0_i32_0 = arith.constant 0 : i32
    %c0_i32_1 = arith.constant 0 : i32
    return %arg0, %c0_i32, %c0_i32_0 : i32, i32, i32
  }
}

</mosaic_0001>

<llo_original>
// kernel: tpu_custom_call.1
$region0: #{tpu_custom_call.1}
  #allocation0 [shape = 'u32[]', space=smem, size = 0x4, offset = 0x4, fixed_abs, tag = 'smem constant byte address 0x4 - core index']
  #allocation1 [shape = 'u32[144,128]{1,0:T(1,128)}', space=vmem, size = 0x12000, scoped, tag = 'internal scratch']
  %s0 = inlined_call_operand.hbm [shape: f32[2,8,8], index: 0, kind: input, shape index: {}]
  %s1 = inlined_call_operand.hbm [shape: f32[2,8,32], index: 1, kind: input, shape index: {}]
  %s2 = inlined_call_operand.hbm [shape: f32[32,128], index: 2, kind: input, shape index: {}]
  %s3 = inlined_call_operand.hbm [shape: f32[32,128], index: 3, kind: input, shape index: {}]
  %s4 = inlined_call_operand.vmem [shape: f32[1,128], index: 4, kind: input, shape index: {}]
  %s5 = inlined_call_operand.vmem [shape: f32[1,128], index: 5, kind: input, shape index: {}]
  %s6 = inlined_call_operand.hbm [shape: f32[2,8,32], index: 6, kind: output, shape index: {}]
  %s7 = sld [smem:[#allocation0]]
  $region73: #{tpu_custom_call.1} parent=0
    _
  %s9 = ssub.s32 1, %s7
  %s10 = scalar_select 0, %s9, %s7
  $region1: #{tpu_custom_call.1} parent=0
    #allocation2 [shape = 'u8[8192]{0}', space=vmem, size = 0x2000, scoped, tag = 'input window, operand 0']
    #allocation3 [shape = 's32[2]{0}', space=sflag, size = 0x8, scoped, tag = 'scoped memory for tpu_custom_call.1']
    #allocation4 [shape = 's32[2]{0}', space=sflag, size = 0x8, scoped, tag = 'scoped memory for tpu_custom_call.1']
    #allocation5 [shape = 'u8[8192]{0}', space=vmem, size = 0x2000, scoped, tag = 'input window, operand 1']
    #allocation6 [shape = 's32[2]{0}', space=sflag, size = 0x8, scoped, tag = 'scoped memory for tpu_custom_call.1']
    #allocation7 [shape = 'u8[16384]{0}', space=vmem, size = 0x4000, scoped, tag = 'input window, operand 2, single buffered']
    #allocation8 [shape = 'u8[16384]{0}', space=vmem, size = 0x4000, scoped, tag = 'input window, operand 3, single buffered']
    #allocation9 [shape = 's32[1]{0}', space=sflag, size = 0x4, scoped, tag = 'scoped memory for tpu_custom_call.1']
    #allocation10 [shape = 'u8[8192]{0}', space=vmem, size = 0x2000, scoped, tag = 'output window, operand 0']
    %11 = vsyncpa [#allocation3], 0
    %s12 = scalar_lea.sflag [#allocation3], 1
    %13 = vsyncpa %s12, 0
    %14 = vsyncpa [#allocation6], 0
    %s15 = scalar_lea.sflag [#allocation6], 1
    %16 = vsyncpa %s15, 0
    %17 = vsyncpa [#allocation9], 0
    %18 = vsyncpa [#allocation4], 0
    %s19 = scalar_lea.sflag [#allocation4], 1
    %20 = vsyncpa %s19, 0
    loop: start=0, step=1, limit=4
    $region2: #{tpu_custom_call.1} parent=1 // loop_pre_header
      _
    $region3: #{tpu_custom_call.1} parent=1 // loop_header
      %s22 = sphi 0, %s26
      %p23 = scmp.ge.s32.totalorder %s22, 4
      %s32 = sphi 0, %s34
      %s35 = sphi 0, %s32
      %s36 = sphi 0, %s35
      %s52 = sphi 0, %s36
      %s58 = sphi 0, %s60
      %s61 = sphi 0, %s58
      %s62 = sphi 0, %s61
      %s78 = sphi 0, %s62
      %s82 = sphi 0, %s82
      %s84 = sphi 0, %s82
      %s85 = sphi 0, %s84
      %s99 = sphi 0, %s85
      %s103 = sphi 0, %s103
      %s105 = sphi 0, %s103
      %s106 = sphi 0, %s105
      %s120 = sphi 0, %s106
      %s124 = sphi 0, %s124
      %s126 = sphi 0, %s124
      %s127 = sphi 0, %s126
      %s141 = sphi 0, %s127
      %s145 = sphi 0, %s145
      %s147 = sphi 0, %s145
      %s148 = sphi 0, %s147
      %s162 = sphi 0, %s148
      %s168 = sphi 0, %s170
      %s171 = sphi 0, %s168
      %s172 = sphi 0, %s171
      %s188 = sphi 0, %s172
    $region4: #{tpu_custom_call.1} parent=1 // loop_header_branch
      %25 = sbr.rel (%p23) target = $region8
    $region5: #{tpu_custom_call.1} parent=1 // loop_body
      %s27 = ssub.s32 %s22, 1
      %s28 = ssub.s32 %s22, 2
      %s29 = sadd.s32 %s22, 1
      %s30 = ssub.s32 %s22, %s29
      %p31 = scmp.eq.s32.totalorder %s30, 0
      %s33 = sadd.s32 %s32, 1
      %s34 = scalar_select %p31, %s32, %s33
      %p37 = pneg %p31
      %p38 = scmp.eq.s32.totalorder %s22, 1
      %p39 = por %p37, %p38
      %p40 = scmp.ne.s32.totalorder %s32, %s35
      %p41 = scmp.eq.s32.totalorder %s22, 0
      %p42 = por %p40, %p41
      %p43 = scmp.ne.s32.totalorder %s32, %s35
      %p44 = scmp.eq.s32.totalorder %s27, 1
      %p45 = por %p43, %p44
      %p46 = scmp.ne.s32.totalorder %s35, %s36
      %p47 = scmp.eq.s32.totalorder %s27, 0
      %p48 = por %p46, %p47
      %p49 = scmp.ne.s32.totalorder %s35, %s36
      %p50 = scmp.eq.s32.totalorder %s28, 1
      %p51 = por %p49, %p50
      %p53 = scmp.ne.s32.totalorder %s36, %s52
      %p54 = scmp.eq.s32.totalorder %s28, 0
      %p55 = por %p53, %p54
      %s56 = ssub.s32 %s22, %s29
      %p57 = scmp.eq.s32.totalorder %s56, 0
      %s59 = sadd.s32 %s58, 1
      %s60 = scalar_select %p57, %s58, %s59
      %p63 = pneg %p57
      %p64 = scmp.eq.s32.totalorder %s22, 1
      %p65 = por %p63, %p64
      %p66 = scmp.ne.s32.totalorder %s58, %s61
      %p67 = scmp.eq.s32.totalorder %s22, 0
      %p68 = por %p66, %p67
      %p69 = scmp.ne.s32.totalorder %s58, %s61
      %p70 = scmp.eq.s32.totalorder %s27, 1
      %p71 = por %p69, %p70
      %p72 = scmp.ne.s32.totalorder %s61, %s62
      %p73 = scmp.eq.s32.totalorder %s27, 0
      %p74 = por %p72, %p73
      %p75 = scmp.ne.s32.totalorder %s61, %s62
      %p76 = scmp.eq.s32.totalorder %s28, 1
      %p77 = por %p75, %p76
      %p79 = scmp.ne.s32.totalorder %s62, %s78
      %p80 = scmp.eq.s32.totalorder %s28, 0
      %p81 = por %p79, %p80
      %s83 = sadd.s32 %s82, 1
      %p86 = scmp.eq.s32.totalorder %s22, 1
      %p87 = scmp.ne.s32.totalorder %s82, %s84
      %p88 = scmp.eq.s32.totalorder %s22, 0
      %p89 = por %p87, %p88
      %p90 = scmp.ne.s32.totalorder %s82, %s84
      %p91 = scmp.eq.s32.totalorder %s27, 1
      %p92 = por %p90, %p91
      %p93 = scmp.ne.s32.totalorder %s84, %s85
      %p94 = scmp.eq.s32.totalorder %s27, 0
      %p95 = por %p93, %p94
      %p96 = scmp.ne.s32.totalorder %s84, %s85
      %p97 = scmp.eq.s32.totalorder %s28, 1
      %p98 = por %p96, %p97
      %p100 = scmp.ne.s32.totalorder %s85, %s99
      %p101 = scmp.eq.s32.totalorder %s28, 0
      %p102 = por %p100, %p101
      %s104 = sadd.s32 %s103, 1
      %p107 = scmp.eq.s32.totalorder %s22, 1
      %p108 = scmp.ne.s32.totalorder %s103, %s105
      %p109 = scmp.eq.s32.totalorder %s22, 0
      %p110 = por %p108, %p109
      %p111 = scmp.ne.s32.totalorder %s103, %s105
      %p112 = scmp.eq.s32.totalorder %s27, 1
      %p113 = por %p111, %p112
      %p114 = scmp.ne.s32.totalorder %s105, %s106
      %p115 = scmp.eq.s32.totalorder %s27, 0
      %p116 = por %p114, %p115
      %p117 = scmp.ne.s32.totalorder %s105, %s106
      %p118 = scmp.eq.s32.totalorder %s28, 1
      %p119 = por %p117, %p118
      %p121 = scmp.ne.s32.totalorder %s106, %s120
      %p122 = scmp.eq.s32.totalorder %s28, 0
      %p123 = por %p121, %p122
      %s125 = sadd.s32 %s124, 1
      %p128 = scmp.eq.s32.totalorder %s22, 1
      %p129 = scmp.ne.s32.totalorder %s124, %s126
      %p130 = scmp.eq.s32.totalorder %s22, 0
      %p131 = por %p129, %p130
      %p132 = scmp.ne.s32.totalorder %s124, %s126
      %p133 = scmp.eq.s32.totalorder %s27, 1
      %p134 = por %p132, %p133
      %p135 = scmp.ne.s32.totalorder %s126, %s127
      %p136 = scmp.eq.s32.totalorder %s27, 0
      %p137 = por %p135, %p136
      %p138 = scmp.ne.s32.totalorder %s126, %s127
      %p139 = scmp.eq.s32.totalorder %s28, 1
      %p140 = por %p138, %p139
      %p142 = scmp.ne.s32.totalorder %s127, %s141
      %p143 = scmp.eq.s32.totalorder %s28, 0
      %p144 = por %p142, %p143
      %s146 = sadd.s32 %s145, 1
      %p149 = scmp.eq.s32.totalorder %s22, 1
      %p150 = scmp.ne.s32.totalorder %s145, %s147
      %p151 = scmp.eq.s32.totalorder %s22, 0
      %p152 = por %p150, %p151
      %p153 = scmp.ne.s32.totalorder %s145, %s147
      %p154 = scmp.eq.s32.totalorder %s27, 1
      %p155 = por %p153, %p154
      %p156 = scmp.ne.s32.totalorder %s147, %s148
      %p157 = scmp.eq.s32.totalorder %s27, 0
      %p158 = por %p156, %p157
      %p159 = scmp.ne.s32.totalorder %s147, %s148
      %p160 = scmp.eq.s32.totalorder %s28, 1
      %p161 = por %p159, %p160
      %p163 = scmp.ne.s32.totalorder %s148, %s162
      %p164 = scmp.eq.s32.totalorder %s28, 0
      %p165 = por %p163, %p164
      %s166 = ssub.s32 %s22, %s29
      %p167 = scmp.eq.s32.totalorder %s166, 0
      %s169 = sadd.s32 %s168, 1
      %s170 = scalar_select %p167, %s168, %s169
      %p173 = pneg %p167
      %p174 = scmp.eq.s32.totalorder %s22, 1
      %p175 = por %p173, %p174
      %p176 = scmp.ne.s32.totalorder %s168, %s171
      %p177 = scmp.eq.s32.totalorder %s22, 0
      %p178 = por %p176, %p177
      %p179 = scmp.ne.s32.totalorder %s168, %s171
      %p180 = scmp.eq.s32.totalorder %s27, 1
      %p181 = por %p179, %p180
      %p182 = scmp.ne.s32.totalorder %s171, %s172
      %p183 = scmp.eq.s32.totalorder %s27, 0
      %p184 = por %p182, %p183
      %p185 = scmp.ne.s32.totalorder %s171, %s172
      %p186 = scmp.eq.s32.totalorder %s28, 1
      %p187 = por %p185, %p186
      %p189 = scmp.ne.s32.totalorder %s172, %s188
      %p190 = scmp.eq.s32.totalorder %s28, 0
      %p191 = por %p189, %p190
      %p192 = scmp.le.s32.totalorder 1, %s22
      %p193 = scmp.lt.s32.totalorder %s22, 3
      %p194 = pnand %p192, %p193
      %p195 = pneg %p194
      // Predicated region
      $region9: #{tpu_custom_call.1} parent=5 // pred_check
        _
      $region10: #{tpu_custom_call.1} parent=5 // pred_check_branch
        %197 = sbr.rel (%p194) target = $region12
      $region11: #{tpu_custom_call.1} parent=5 // pred_region
        %s198 = ssub.s32 %s22, 1
        // Predicated region
        $region13: #{tpu_custom_call.1} parent=11 // pred_check
          %p199 = pneg %p95
        $region14: #{tpu_custom_call.1} parent=11 // pred_check_branch
          %201 = sbr.rel (%p199) target = $region16
        $region15: #{tpu_custom_call.1} parent=11 // pred_region
          %s203 = ssub.s32 512, 512
          %204 = vsyncadd [#allocation6], %s203
          %s205 = sshll.u32 [#allocation7], 4
          %s206 = int_to_ptr.vmem [resolvable:$true] %s205
          %211 = dma.hbm_to_vmem [thread:$0]  %s2, 512, %s206, [#allocation6], 128, 128, 8
        $region16: #{tpu_custom_call.1} parent=11 // pred_fallthru
          _
        // Predicated region
        $region17: #{tpu_custom_call.1} parent=11 // pred_check
          %p212 = pneg %p116
        $region18: #{tpu_custom_call.1} parent=11 // pred_check_branch
          %214 = sbr.rel (%p212) target = $region20
        $region19: #{tpu_custom_call.1} parent=11 // pred_region
          %s216 = ssub.s32 512, 512
          %217 = vsyncadd [#allocation9], %s216
          %s218 = sshll.u32 [#allocation8], 4
          %s219 = int_to_ptr.vmem [resolvable:$true] %s218
          %224 = dma.hbm_to_vmem [thread:$0]  %s3, 512, %s219, [#allocation9], 128, 128, 8
        $region20: #{tpu_custom_call.1} parent=11 // pred_fallthru
          _
        // Predicated region
        $region21: #{tpu_custom_call.1} parent=11 // pred_check
          %p225 = pneg %p137
        $region22: #{tpu_custom_call.1} parent=11 // pred_check_branch
          %227 = sbr.rel (%p225) target = $region24
        $region23: #{tpu_custom_call.1} parent=11 // pred_region
          _
        $region24: #{tpu_custom_call.1} parent=11 // pred_fallthru
          _
        // Predicated region
        $region25: #{tpu_custom_call.1} parent=11 // pred_check
          %p228 = pneg %p158
        $region26: #{tpu_custom_call.1} parent=11 // pred_check_branch
          %230 = sbr.rel (%p228) target = $region28
        $region27: #{tpu_custom_call.1} parent=11 // pred_region
          _
        $region28: #{tpu_custom_call.1} parent=11 // pred_fallthru
          _
      $region12: #{tpu_custom_call.1} parent=5 // pred_fallthru
        _
      %p231 = scmp.lt.s32.totalorder %s22, 2
      // Predicated region
      $region29: #{tpu_custom_call.1} parent=5 // pred_check
        %p232 = pneg %p231
      $region30: #{tpu_custom_call.1} parent=5 // pred_check_branch
        %234 = sbr.rel (%p232) target = $region32
      $region31: #{tpu_custom_call.1} parent=5 // pred_region
        // Predicated region
        $region33: #{tpu_custom_call.1} parent=31 // pred_check
          %p235 = pneg %p42
        $region34: #{tpu_custom_call.1} parent=31 // pred_check_branch
          %237 = sbr.rel (%p235) target = $region36
        $region35: #{tpu_custom_call.1} parent=31 // pred_region
          %s238 = sand.u32 %s32, 1
          %s239 = scalar_lea.sflag [#allocation3], %s238
          %s240 = sand.u32 %s32, 1
          %s241 = smul.addr %s240, 8
          %s242 = scalar_lea.vmem [#allocation2], %s241
          %s244 = ssub.s32 128, 128
          %245 = vsyncadd %s239, %s244
          %s246 = smul.addr %s22, 128
          %s247 = scalar_lea.hbm %s0, %s246
          %s249 = sshll.u32 %s242, 4
          %s250 = int_to_ptr.vmem [resolvable:$true] %s249
          %252 = dma.hbm_to_vmem [thread:$0]  %s247, 128, %s250, %s239
        $region36: #{tpu_custom_call.1} parent=31 // pred_fallthru
          _
        // Predicated region
        $region37: #{tpu_custom_call.1} parent=31 // pred_check
          %p253 = pneg %p68
        $region38: #{tpu_custom_call.1} parent=31 // pred_check_branch
          %255 = sbr.rel (%p253) target = $region40
        $region39: #{tpu_custom_call.1} parent=31 // pred_region
          %s256 = sand.u32 %s22, 1
          %s257 = scalar_lea.sflag [#allocation6], %s256
          %s258 = sand.u32 %s58, 1
          %s259 = smul.addr %s258, 8
          %s260 = scalar_lea.vmem [#allocation5], %s259
          %s262 = ssub.s32 128, 128
          %263 = vsyncadd %s257, %s262
          %s264 = smul.addr %s22, 128
          %s265 = scalar_lea.hbm %s1, %s264
          %s267 = sshll.u32 %s260, 4
          %s268 = int_to_ptr.vmem [resolvable:$true] %s267
          %270 = dma.hbm_to_vmem [thread:$0]  %s265, 128, %s268, %s257
        $region40: #{tpu_custom_call.1} parent=31 // pred_fallthru
          _
      $region32: #{tpu_custom_call.1} parent=5 // pred_fallthru
        _
      %p271 = scmp.le.s32.totalorder 1, %s22
      %p272 = scmp.lt.s32.totalorder %s22, 3
      %p273 = pnand %p271, %p272
      %p274 = pneg %p273
      // Predicated region
      $region41: #{tpu_custom_call.1} parent=5 // pred_check
        _
      $region42: #{tpu_custom_call.1} parent=5 // pred_check_branch
        %276 = sbr.rel (%p273) target = $region44
      $region43: #{tpu_custom_call.1} parent=5 // pred_region
        %s277 = ssub.s32 %s22, 1
        %s278 = sand.u32 %s35, 1
        %s279 = scalar_lea.sflag [#allocation3], %s278
        %s280 = sand.u32 %s35, 1
        %s281 = smul.addr %s280, 8
        %s282 = scalar_lea.vmem [#allocation2], %s281
        // Predicated region
        $region45: #{tpu_custom_call.1} parent=43 // pred_check
          %p283 = pneg %p48
        $region46: #{tpu_custom_call.1} parent=43 // pred_check_branch
          %285 = sbr.rel (%p283) target = $region48
        $region47: #{tpu_custom_call.1} parent=43 // pred_region
          %286 = dma.done %s279, 128
        $region48: #{tpu_custom_call.1} parent=43 // pred_fallthru
          _
        %s287 = sand.u32 %s27, 1
        %s288 = scalar_lea.sflag [#allocation6], %s287
        %s289 = sand.u32 %s61, 1
        %s290 = smul.addr %s289, 8
        %s291 = scalar_lea.vmem [#allocation5], %s290
        // Predicated region
        $region49: #{tpu_custom_call.1} parent=43 // pred_check
          %p292 = pneg %p74
        $region50: #{tpu_custom_call.1} parent=43 // pred_check_branch
          %294 = sbr.rel (%p292) target = $region52
        $region51: #{tpu_custom_call.1} parent=43 // pred_region
          %295 = dma.done %s288, 128
        $region52: #{tpu_custom_call.1} parent=43 // pred_fallthru
          _
        // Predicated region
        $region53: #{tpu_custom_call.1} parent=43 // pred_check
          %p296 = pneg %p95
        $region54: #{tpu_custom_call.1} parent=43 // pred_check_branch
          %298 = sbr.rel (%p296) target = $region56
        $region55: #{tpu_custom_call.1} parent=43 // pred_region
          %299 = dma.done [#allocation6], 512
        $region56: #{tpu_custom_call.1} parent=43 // pred_fallthru
          _
        // Predicated region
        $region57: #{tpu_custom_call.1} parent=43 // pred_check
          %p300 = pneg %p116
        $region58: #{tpu_custom_call.1} parent=43 // pred_check_branch
          %302 = sbr.rel (%p300) target = $region60
        $region59: #{tpu_custom_call.1} parent=43 // pred_region
          %303 = dma.done [#allocation9], 512
        $region60: #{tpu_custom_call.1} parent=43 // pred_fallthru
          _
        %s304 = sand.u32 %s35, 1
        %s305 = scalar_lea.sflag [#allocation3], %s304
        %s306 = sand.u32 %s35, 1
        %s307 = smul.addr %s306, 8
        %s308 = scalar_lea.vmem [#allocation2], %s307
        %p309 = pneg %p48
        %p310 = pneg %p45
        %s311 = sand.u32 %s27, 1
        %s312 = scalar_lea.sflag [#allocation6], %s311
        %s313 = sand.u32 %s61, 1
        %s314 = smul.addr %s313, 8
        %s315 = scalar_lea.vmem [#allocation5], %s314
        %p316 = pneg %p74
        %p317 = pneg %p71
        %p318 = pneg %p95
        %p319 = pneg %p92
        %p320 = pneg %p116
        %p321 = pneg %p113
        %p322 = pneg %p137
        %p323 = pneg %p134
        %p324 = pneg %p158
        %p325 = pneg %p155
        %p326 = pneg %p184
        %p327 = pneg %p181
        %s328 = sand.u32 %s171, 1
        %s329 = scalar_lea.sflag [#allocation4], %s328
        %s330 = sand.u32 %s171, 1
        %s331 = smul.addr %s330, 8
        %s332 = scalar_lea.vmem [#allocation10], %s331
        %v333 = vld [vmem:[%s282] sm:$0xff]
        %v334 = vld [vmem:[#allocation7] sm:$0xff]
        %v335 = vld [vmem:[#allocation7 + $0x8] sm:$0xff]
        %v336 = vld [vmem:[#allocation7 + $0x10] sm:$0xff]
        %v337 = vld [vmem:[#allocation7 + $0x18] sm:$0xff]
        %v338 = vld [vmem:[#allocation8] sm:$0xff]
        %v339 = vld [vmem:[#allocation8 + $0x8] sm:$0xff]
        %v340 = vld [vmem:[#allocation8 + $0x10] sm:$0xff]
        %v341 = vld [vmem:[#allocation8 + $0x18] sm:$0xff]
        %v342 = vld [vmem:[%s4] sm:$0x1]
        %v343 = vld [vmem:[%s5] sm:$0x1]
        %vm344 = vcmask 64512
        %v345 = vsel %vm344, %v333, 0.0
        %346 = vadd.xlane.f32.xlu0 %v345
        %v347 = vpop.xlane.xlu0 %346
        %v348 = vld [vmem:[%s291] sm:$0xff]
        %350 = vset.pattern.permute.xlu0 0
        %351 = vperm.xlu0 %350, %v333
        %v352 = vpop.permute.xlu0 %351
        %v354 = vlaneseq
        %v355 = vshrl.u32 %v354, 7
        %v356 = vsub.s32 0, %v355
        %v357 = vrot.slane %v348, %v356
        %v358 = vmul.f32 %v352, %v357
        %359 = vset.pattern.permute.xlu0 1
        %360 = vperm.xlu0 %359, %v333
        %v361 = vpop.permute.xlu0 %360
        %v363 = vlaneseq
        %v364 = vshrl.u32 %v363, 7
        %v365 = vsub.s32 1, %v364
        %v366 = vrot.slane %v348, %v365
        %v367 = vmul.f32 %v361, %v366
        %v368 = vadd.f32 %v358, %v367
        %369 = vset.pattern.permute.xlu0 2
        %370 = vperm.xlu0 %369, %v333
        %v371 = vpop.permute.xlu0 %370
        %v373 = vlaneseq
        %v374 = vshrl.u32 %v373, 7
        %v375 = vsub.s32 2, %v374
        %v376 = vrot.slane %v348, %v375
        %v377 = vmul.f32 %v371, %v376
        %v378 = vadd.f32 %v368, %v377
        %379 = vset.pattern.permute.xlu0 3
        %380 = vperm.xlu0 %379, %v333
        %v381 = vpop.permute.xlu0 %380
        %v383 = vlaneseq
        %v384 = vshrl.u32 %v383, 7
        %v385 = vsub.s32 3, %v384
        %v386 = vrot.slane %v348, %v385
        %v387 = vmul.f32 %v381, %v386
        %v388 = vadd.f32 %v378, %v387
        %389 = vset.pattern.permute.xlu0 4
        %390 = vperm.xlu0 %389, %v333
        %v391 = vpop.permute.xlu0 %390
        %v393 = vlaneseq
        %v394 = vshrl.u32 %v393, 7
        %v395 = vsub.s32 4, %v394
        %v396 = vrot.slane %v348, %v395
        %v397 = vmul.f32 %v391, %v396
        %v398 = vadd.f32 %v388, %v397
        %399 = vset.pattern.permute.xlu0 5
        %400 = vperm.xlu0 %399, %v333
        %v401 = vpop.permute.xlu0 %400
        %v403 = vlaneseq
        %v404 = vshrl.u32 %v403, 7
        %v405 = vsub.s32 5, %v404
        %v406 = vrot.slane %v348, %v405
        %v407 = vmul.f32 %v401, %v406
        %v408 = vadd.f32 %v398, %v407
        %409 = vset.pattern.permute.xlu0 6
        %410 = vperm.xlu0 %409, %v333
        %v411 = vpop.permute.xlu0 %410
        %v413 = vlaneseq
        %v414 = vshrl.u32 %v413, 7
        %v415 = vsub.s32 6, %v414
        %v416 = vrot.slane %v348, %v415
        %v417 = vmul.f32 %v411, %v416
        %v418 = vadd.f32 %v408, %v417
        %419 = vset.pattern.permute.xlu0 7
        %420 = vperm.xlu0 %419, %v333
        %v421 = vpop.permute.xlu0 %420
        %v423 = vlaneseq
        %v424 = vshrl.u32 %v423, 7
        %v425 = vsub.s32 7, %v424
        %v426 = vrot.slane %v348, %v425
        %v427 = vmul.f32 %v421, %v426
        %v428 = vadd.f32 %v418, %v427
        %vm429 = vcmask 261120
        %v431 = vsel %vm429, %v348, 0
        %433 = vmatprep.subr.mxu0 0.0
        %434 = vmatpush1.msra.mxu0 0.0
        %435 = vmatprep.subr.mxu0 0.0
        %436 = vmatpush1.msra.mxu0 0.0
        %437 = vmatprep.subr.mxu0 0.0
        %438 = vmatpush1.msra.mxu0 0.0
        %439 = vmatprep.subr.mxu0 0.0
        %440 = vmatpush1.msra.mxu0 0.0
        %441 = vmatprep.subr.mxu0 0.0
        %442 = vmatpush1.msra.mxu0 0.0
        %443 = vmatprep.subr.mxu0 0.0
        %444 = vmatpush1.msra.mxu0 0.0
        %445 = vmatprep.subr.mxu0 0.0
        %446 = vmatpush1.msra.mxu0 0.0
        %447 = vmatprep.subr.mxu0 0.0
        %448 = vmatpush1.msra.mxu0 0.0
        %449 = vmatprep.subr.mxu0 0.0
        %450 = vmatpush1.msra.mxu0 0.0
        %451 = vmatprep.subr.mxu0 0.0
        %452 = vmatpush1.msra.mxu0 0.0
        %453 = vmatprep.subr.mxu0 0.0
        %454 = vmatpush1.msra.mxu0 0.0
        %455 = vmatprep.subr.mxu0 0.0
        %456 = vmatpush1.msra.mxu0 0.0
        %457 = vmatprep.subr.mxu0 0.0
        %458 = vmatpush1.msra.mxu0 %v341
        %459 = vmatprep.subr.mxu0 0.0
        %460 = vmatpush1.msra.mxu0 %v340
        %461 = vmatprep.subr.mxu0 0.0
        %462 = vmatpush1.msra.mxu0 %v339
        %463 = vmatprep.subr.mxu0 0.0
        %464 = vmatpush1.msra.mxu0 %v338
        %465 = vmatprep.subr.mxu0 0.0
        %466 = vmatpush2.msra.mxu0 0.0
        %467 = vmatprep.subr.mxu0 0.0
        %468 = vmatpush2.msra.mxu0 0.0
        %469 = vmatprep.subr.mxu0 0.0
        %470 = vmatpush2.msra.mxu0 0.0
        %471 = vmatprep.subr.mxu0 0.0
        %472 = vmatpush2.msra.mxu0 0.0
        %473 = vmatprep.subr.mxu0 0.0
        %474 = vmatpush2.msra.mxu0 0.0
        %475 = vmatprep.subr.mxu0 0.0
        %476 = vmatpush2.msra.mxu0 0.0
        %477 = vmatprep.subr.mxu0 0.0
        %478 = vmatpush2.msra.mxu0 0.0
        %479 = vmatprep.subr.mxu0 0.0
        %480 = vmatpush2.msra.mxu0 0.0
        %481 = vmatprep.subr.mxu0 0.0
        %482 = vmatpush2.msra.mxu0 0.0
        %483 = vmatprep.subr.mxu0 0.0
        %484 = vmatpush2.msra.mxu0 0.0
        %485 = vmatprep.subr.mxu0 0.0
        %486 = vmatpush2.msra.mxu0 0.0
        %487 = vmatprep.subr.mxu0 0.0
        %488 = vmatpush2.msra.mxu0 0.0
        %489 = vmatprep.subr.mxu0 0.0
        %490 = vmatpush2.msra.mxu0 0.0
        %491 = vmatprep.subr.mxu0 0.0
        %492 = vmatpush2.msra.mxu0 0.0
        %493 = vmatprep.subr.mxu0 0.0
        %494 = vmatpush2.msra.mxu0 0.0
        %495 = vmatprep.subr.mxu0 0.0
        %496 = vmatpush2.msra.mxu0 0.0
        %497 = vmatprep.mubr.f32.mxu0 0.0
        %498 = vmatmul.mubr.f32.gmra.mxu0 %v431
        %v499 = vpop.f32.mrf.mxu0
        %v500 = vadd.f32 0.0, %v499
        %v501 = vpop.f32.mrf.mxu0
        %502 = vdwg.mxu0
        %v504 = vsel %vm429, %v428, 0
        %506 = vmatprep.subr.mxu0 0.0
        %507 = vmatpush1.msra.mxu0 0.0
        %508 = vmatprep.subr.mxu0 0.0
        %509 = vmatpush1.msra.mxu0 0.0
        %510 = vmatprep.subr.mxu0 0.0
        %511 = vmatpush1.msra.mxu0 0.0
        %512 = vmatprep.subr.mxu0 0.0
        %513 = vmatpush1.msra.mxu0 0.0
        %514 = vmatprep.subr.mxu0 0.0
        %515 = vmatpush1.msra.mxu0 0.0
        %516 = vmatprep.subr.mxu0 0.0
        %517 = vmatpush1.msra.mxu0 0.0
        %518 = vmatprep.subr.mxu0 0.0
        %519 = vmatpush1.msra.mxu0 0.0
        %520 = vmatprep.subr.mxu0 0.0
        %521 = vmatpush1.msra.mxu0 0.0
        %522 = vmatprep.subr.mxu0 0.0
        %523 = vmatpush1.msra.mxu0 0.0
        %524 = vmatprep.subr.mxu0 0.0
        %525 = vmatpush1.msra.mxu0 0.0
        %526 = vmatprep.subr.mxu0 0.0
        %527 = vmatpush1.msra.mxu0 0.0
        %528 = vmatprep.subr.mxu0 0.0
        %529 = vmatpush1.msra.mxu0 0.0
        %530 = vmatprep.subr.mxu0 0.0
        %531 = vmatpush1.msra.mxu0 %v337
        %532 = vmatprep.subr.mxu0 0.0
        %533 = vmatpush1.msra.mxu0 %v336
        %534 = vmatprep.subr.mxu0 0.0
        %535 = vmatpush1.msra.mxu0 %v335
        %536 = vmatprep.subr.mxu0 0.0
        %537 = vmatpush1.msra.mxu0 %v334
        %538 = vmatprep.subr.mxu0 0.0
        %539 = vmatpush2.msra.mxu0 0.0
        %540 = vmatprep.subr.mxu0 0.0
        %541 = vmatpush2.msra.mxu0 0.0
        %542 = vmatprep.subr.mxu0 0.0
        %543 = vmatpush2.msra.mxu0 0.0
        %544 = vmatprep.subr.mxu0 0.0
        %545 = vmatpush2.msra.mxu0 0.0
        %546 = vmatprep.subr.mxu0 0.0
        %547 = vmatpush2.msra.mxu0 0.0
        %548 = vmatprep.subr.mxu0 0.0
        %549 = vmatpush2.msra.mxu0 0.0
        %550 = vmatprep.subr.mxu0 0.0
        %551 = vmatpush2.msra.mxu0 0.0
        %552 = vmatprep.subr.mxu0 0.0
        %553 = vmatpush2.msra.mxu0 0.0
        %554 = vmatprep.subr.mxu0 0.0
        %555 = vmatpush2.msra.mxu0 0.0
        %556 = vmatprep.subr.mxu0 0.0
        %557 = vmatpush2.msra.mxu0 0.0
        %558 = vmatprep.subr.mxu0 0.0
        %559 = vmatpush2.msra.mxu0 0.0
        %560 = vmatprep.subr.mxu0 0.0
        %561 = vmatpush2.msra.mxu0 0.0
        %562 = vmatprep.subr.mxu0 0.0
        %563 = vmatpush2.msra.mxu0 0.0
        %564 = vmatprep.subr.mxu0 0.0
        %565 = vmatpush2.msra.mxu0 0.0
        %566 = vmatprep.subr.mxu0 0.0
        %567 = vmatpush2.msra.mxu0 0.0
        %568 = vmatprep.subr.mxu0 0.0
        %569 = vmatpush2.msra.mxu0 0.0
        %570 = vmatprep.mubr.f32.mxu0 0.0
        %571 = vmatmul.mubr.f32.gmra.mxu0 %v504
        %v572 = vpop.f32.mrf.mxu0
        %v573 = vadd.f32 %v500, %v572
        %v574 = vpop.f32.mrf.mxu0
        %575 = vdwg.mxu0
        %v577 = vlaneseq
        %v578 = vshrl.u32 %v577, 7
        %v579 = vsub.s32 0, %v578
        %v580 = vrot.slane %v342, %v579
        %v582 = vmul.f32 %v347, %v580
        %v583 = vadd.f32 %v573, %v582
        %v585 = vlaneseq
        %v586 = vshrl.u32 %v585, 7
        %v587 = vsub.s32 0, %v586
        %v588 = vrot.slane %v343, %v587
        %v590 = vadd.f32 %v583, %v588
        %v591 = vxor.u32 %v590, 2147483648
        %v592 = vmul.f32 %v591, 1.442695
        %v593 = vpow.pop %v592
        %v594 = vadd.f32 %v593, 1.0
        %v595 = vrcp.pop %v594
        %v596 = vmul.f32 1.0, %v595
        %598 = vrot.lane.b32.xlu0 %v590, 32
        %v599 = vpop.permute.xlu0 %598
        %v601 = vmul.f32 %v596, %v599
        %603 = vrot.lane.b32.xlu0 %v601, 64
        %v604 = vpop.permute.xlu0 %603
        %v606 = vadd.f32 %v590, %v604
        %v607 = vtanh.pop %v606
        %609 = vrot.lane.b32.xlu0 %v607, 64
        %v610 = vpop.permute.xlu0 %609
        %v612 = vsub.f32 %v348, %v610
        %614 = vrot.lane.b32.xlu0 %v612, 32
        %v615 = vpop.permute.xlu0 %614
        %v617 = vmul.f32 %v596, %v615
        %619 = vrot.lane.b32.xlu0 %v617, 32
        %v620 = vpop.permute.xlu0 %619
        %v622 = vadd.f32 %v607, %v620
        %624 = vrot.lane.b32.xlu0 %v622, 64
        %v625 = vpop.permute.xlu0 %624
        %627 = vst.msk [vmem:[%s332] sm:$0xff] %vm429, %v625
        %s628 = sand.u32 %s171, 1
        %s629 = scalar_lea.sflag [#allocation4], %s628
        %s630 = sand.u32 %s171, 1
        %s631 = smul.addr %s630, 8
        %s632 = scalar_lea.vmem [#allocation10], %s631
        // Predicated region
        $region61: #{tpu_custom_call.1} parent=43 // pred_check
          %p633 = pneg %p181
        $region62: #{tpu_custom_call.1} parent=43 // pred_check_branch
          %635 = sbr.rel (%p633) target = $region64
        $region63: #{tpu_custom_call.1} parent=43 // pred_region
          %s637 = ssub.s32 128, 128
          %638 = vsyncadd %s629, %s637
          %s639 = smul.addr %s27, 128
          %s640 = scalar_lea.hbm %s6, %s639
          %s642 = sshll.u32 %s632, 4
          %s643 = int_to_ptr.vmem [resolvable:$true] %s642
          %645 = dma.vmem_to_hbm [thread:$0]  %s643, 128, %s640, %s629
        $region64: #{tpu_custom_call.1} parent=43 // pred_fallthru
          _
      $region44: #{tpu_custom_call.1} parent=5 // pred_fallthru
        _
      %p646 = scmp.le.s32.totalorder 2, %s22
      // Predicated region
      $region65: #{tpu_custom_call.1} parent=5 // pred_check
        %p647 = pneg %p646
      $region66: #{tpu_custom_call.1} parent=5 // pred_check_branch
        %649 = sbr.rel (%p647) target = $region68
      $region67: #{tpu_custom_call.1} parent=5 // pred_region
        %s650 = ssub.s32 %s22, 2
        // Predicated region
        $region69: #{tpu_custom_call.1} parent=67 // pred_check
          %p651 = pneg %p187
        $region70: #{tpu_custom_call.1} parent=67 // pred_check_branch
          %653 = sbr.rel (%p651) target = $region72
        $region71: #{tpu_custom_call.1} parent=67 // pred_region
          %s654 = sand.u32 %s172, 1
          %s655 = scalar_lea.sflag [#allocation4], %s654
          %s656 = sand.u32 %s172, 1
          %s657 = smul.addr %s656, 8
          %s658 = scalar_lea.vmem [#allocation10], %s657
          %659 = dma.done %s655, 128
        $region72: #{tpu_custom_call.1} parent=67 // pred_fallthru
          _
      $region68: #{tpu_custom_call.1} parent=5 // pred_fallthru
        _
    $region6: #{tpu_custom_call.1} parent=1 // loop_footer
      %s26 = sadd.s32 1, %s22
    $region7: #{tpu_custom_call.1} parent=1 // loop_footer_branch
      %21 = sbr.rel target = $region3
    $region8: #{tpu_custom_call.1} parent=1 // loop_exit
      _
    %660 = vsyncpa [#allocation3], 1
    %s661 = scalar_lea.sflag [#allocation3], 1
    %662 = vsyncpa %s661, 1
    %663 = vsyncpa [#allocation6], 1
    %s664 = scalar_lea.sflag [#allocation6], 1
    %665 = vsyncpa %s664, 1
    %666 = vsyncpa [#allocation9], 1
    %667 = vsyncpa [#allocation4], 1
    %s668 = scalar_lea.sflag [#allocation4], 1
    %669 = vsyncpa %s668, 1

</llo_original>
